<compile_context>
chip_gen: v6e
topology: v6e:2x2x1
jax: 0.10.0
libtpu: 0.0.40
codegen_flags: <defaults>
</compile_context>

<pallas_src>
import math

import jax
import jax.numpy as jnp
import numpy as np
from jax import lax
from jax.experimental import pallas as pl
from jax.experimental.pallas import tpu as pltpu

_SELU_ALPHA = 1.6732632423543772848170429916717
_SELU_SCALE = 1.0507009873554804934193349852946


def _selu(x):
    neg = _SELU_ALPHA * (jnp.exp(jnp.minimum(x, 0.0)) - 1.0)
    return _SELU_SCALE * jnp.where(x > 0.0, x, neg)


def _pick_vmem_limit():
    """Scoped-VMEM limit per generation: ~75% of physical, capped at 96 MiB
    (v5e/v6e: 128 MiB physical -> 96 MiB; v7x: 64 MiB physical -> 48 MiB)."""
    cap = 64 * 1024 * 1024
    try:
        info = pltpu.get_tpu_info()
        cap = int(getattr(info, "vmem_capacity_bytes", cap))
    except Exception:
        pass
    return max(32 * 1024 * 1024, min(96 * 1024 * 1024, (cap * 3) // 4))


def _make_encoder_kernel(num_layers):
    """Fused whole-encoder kernel: one grid step == one batch block, all layers."""

    def kernel(*refs):
        x_ref, out_ref = refs[0], refs[-1]
        layer_refs = refs[1:-1]
        a = x_ref[...].astype(jnp.float32)           # [B_blk*H, W*Cin]
        for layer in range(num_layers):
            r_ref, t_ref, b_ref = layer_refs[3 * layer:3 * layer + 3]
            # Single stacked row-gather matmul for all kh and all images:
            #   [3*B_blk*OH, B_blk*H] @ [B_blk*H, W*Cin]
            rows_all = jnp.dot(r_ref[...], a, preferred_element_type=jnp.float32)
            m = rows_all.shape[0] // 3               # = B_blk*OH
            acc = b_ref[...].astype(jnp.float32)     # [1, OW*Cout] -> broadcasts
            for kh in range(3):                      # 3 independent MXU dots
                acc = acc + jnp.dot(rows_all[kh * m:(kh + 1) * m, :], t_ref[kh],
                                    preferred_element_type=jnp.float32)
            a = _selu(acc)                           # next layer's [B*OH, OW*C]
        out_ref[...] = a.astype(out_ref.dtype)

    return kernel


def _build_layer_mats(w_oihw, b, hin, win, b_blk):
    """Fold the (3x3, stride-2, pad-1) gather + weights into matmul operands.

    Activation layout: [B_blk*H, W*Cin] (batch/rows stacked, channels fastest).
      conv[b*OH+oh, ow*Cout+co]
        = bias[co] + sum_kh ((R_stack @ A)[kh*B*OH + b*OH + oh] @ T[kh])[ow*Cout+co]
    R_stack[kh*B*OH + b*OH + oh, b*H + r] = 1 iff r == 2*oh + kh - 1 (pad rows absent);
    T[kh][w*Cin+ci, ow*Cout+co] = weight[co,ci,kh,kw] with w == 2*ow + kw - 1.
    """
    cout, cin, _, _ = w_oihw.shape
    oh = (hin + 2 - 3) // 2 + 1
    ow = (win + 2 - 3) // 2 + 1
    w_hw = np.transpose(np.asarray(w_oihw, np.float32), (2, 3, 1, 0))  # [kh,kw,ci,co]

    # Column gather: S[w, p, kw] = 1  iff  w == 2*p + kw - 1  (and in range).
    s = np.zeros((win, ow, 3), np.float32)
    for kw in range(3):
        c = 2 * np.arange(ow) + kw - 1
        v = (c >= 0) & (c < win)
        s[c[v], np.arange(ow)[v], kw] = 1.0

    t_all = np.zeros((3, win * cin, ow * cout), np.float32)
    for kh in range(3):
        t4 = np.einsum("wpk,kic->wipc", s, w_hw[kh])   # [win, cin, ow, cout]
        t_all[kh] = t4.reshape(win * cin, ow * cout)

    # Batch-stacked row gather, row ordering (kh, b, oh).
    r_stack = np.zeros((3 * b_blk * oh, b_blk * hin), np.float32)
    ohs = np.arange(oh)
    for kh in range(3):
        r = 2 * ohs + kh - 1
        v = (r >= 0) & (r < hin)
        for bi in range(b_blk):
            r_stack[kh * b_blk * oh + bi * oh + ohs[v], bi * hin + r[v]] = 1.0

    brow = np.tile(np.asarray(b, np.float32).reshape(1, cout), (1, ow))
    return r_stack, t_all, brow.reshape(1, ow * cout)


def _encoder_pallas_call(x_flat, mats, b_blk, h0, out_p, out_c, vmem_limit):
    """Single fused pallas_call: grid over batch BLOCKS, all layers on-chip."""
    n_pad = x_flat.shape[0] // h0
    steps = n_pad // b_blk

    in_specs = [pl.BlockSpec((b_blk * h0, x_flat.shape[1]), lambda i: (i, 0))]
    inputs = [x_flat]
    for (r, t, brow) in mats:
        in_specs.append(pl.BlockSpec(r.shape, lambda i: (0, 0)))
        in_specs.append(pl.BlockSpec(t.shape, lambda i: (0, 0, 0)))
        in_specs.append(pl.BlockSpec(brow.shape, lambda i: (0, 0)))
        inputs += [r, t, brow]

    return pl.pallas_call(
        _make_encoder_kernel(len(mats)),
        out_shape=jax.ShapeDtypeStruct((n_pad * out_p, out_p * out_c), x_flat.dtype),
        grid=(steps,),
        in_specs=in_specs,
        out_specs=pl.BlockSpec((b_blk * out_p, out_p * out_c), lambda i: (i, 0)),
        compiler_params=pltpu.CompilerParams(
            dimension_semantics=("parallel",),          # megacore: shard batch blocks
            vmem_limit_bytes=vmem_limit,
        ),
    )(*inputs)


class EncoderPallas:
    """Mirror of the PyTorch Encoder with deterministic synthetic params."""

    def __init__(self, img_size, num_patches, dim, key):
        self.scale = int(math.log2(img_size / num_patches))
        self.dim = dim
        self.num_patches = num_patches
        self.img_size = img_size

        layer_io = [(3, 3)] * (self.scale - 1) + [(3, dim)]
        self.params = []
        for (cin, cout) in layer_io:
            key, k_w, k_b = jax.random.split(key, 3)
            fan_in = cin * 3 * 3
            bound = 1.0 / math.sqrt(fan_in)   # PyTorch default Conv2d init range
            w = jax.random.uniform(k_w, (cout, cin, 3, 3), jnp.float32, -bound, bound)
            b = jax.random.uniform(k_b, (cout,), jnp.float32, -bound, bound)
            self.params.append((w, b))

        self._vmem_limit = _pick_vmem_limit()
        self._mats_cache = {}
        self._forward = jax.jit(self._forward_impl, static_argnums=(1,))

    # ---- host-side helpers -------------------------------------------------

    def _get_mats(self, b_blk):
        """R_stack depends on the batch block size; build + cache per b_blk."""
        if b_blk not in self._mats_cache:
            mats = []
            h = self.img_size
            for (w, b) in self.params:
                r, t, brow = _build_layer_mats(np.asarray(w), np.asarray(b),
                                               h, h, b_blk)
                mats.append((jnp.asarray(r), jnp.asarray(t), jnp.asarray(brow)))
                h = (h + 2 - 3) // 2 + 1
            self._mats_cache[b_blk] = mats
        return self._mats_cache[b_blk]

    def _choose_batch_block(self, n):
        """Largest batch block that fits the per-generation VMEM budget, while
        keeping >=8 grid steps when the batch is large enough to allow it."""
        h0 = self.img_size
        wc0 = self.img_size * 3
        p, dim = self.num_patches, self.dim
        # double-buffered in/out blocks + generous in-kernel working set, f32
        per_img = 4 * (2 * h0 * wc0 + 2 * p * p * dim + 6 * h0 * wc0)
        budget = int(self._vmem_limit * 0.6)
        b = max(1, min(n, budget // max(per_img, 1)))
        if n >= 8:                          # >=8 steps (>=4 per TC on v7x)
            b = min(b, max(1, n // 8))
        if b < n:                           # multi-step: keep blocks 8-row aligned
            align = 8 // math.gcd(8, p)
            b = max(align, (b // align) * align)
        return int(b)

    # ---- forward -------------------------------------------------------------

    def _forward_impl(self, x_nchw, b_blk, *flat_mats):
        n, c, h, w = x_nchw.shape
        mats = [tuple(flat_mats[3 * i:3 * i + 3]) for i in range(len(self.params))]
        n_pad = -(-n // b_blk) * b_blk
        # NOTE: these transposes/reshapes are pure layout plumbing to keep the
        # NCHW module interface; if the producer/consumer used NHWC they drop.
        x_nhwc = jnp.transpose(x_nchw, (0, 2, 3, 1))
        if n_pad != n:
            x_nhwc = jnp.pad(x_nhwc, ((0, n_pad - n), (0, 0), (0, 0), (0, 0)))
        x_flat = x_nhwc.reshape(n_pad * h, w * c)      # [N_pad*H, W*C], lane-dense
        out2d = _encoder_pallas_call(x_flat, mats, b_blk, h,
                                     self.num_patches, self.dim, self._vmem_limit)
        p, dim = self.num_patches, self.dim
        out = out2d.reshape(n_pad, p, p, dim)[:n]
        return jnp.transpose(out, (0, 3, 1, 2))        # NHWC -> NCHW

    def __call__(self, x_nchw):
        b_blk = self._choose_batch_block(int(x_nchw.shape[0]))
        flat = [m for triple in self._get_mats(b_blk) for m in triple]
        return self._forward(x_nchw, b_blk, *flat)


def _reference_forward(x_nchw, params):
    """Pure-JAX reference (XLA conv) for validation."""
    x = x_nchw
    for w, b in params:
        x = lax.conv_general_dilated(
            x, w, window_strides=(2, 2), padding=((1, 1), (1, 1)),
            dimension_numbers=("NCHW", "OIHW", "NCHW"),
            precision=lax.Precision.HIGHEST)
        x = x + b.reshape(1, -1, 1, 1)
        x = jax.nn.selu(x)
    return x


if __name__ == "__main__":
    img_size, num_patches, dim = 16, 4, 32
    key = jax.random.PRNGKey(0)
    key, k_x = jax.random.split(key)

    encoder = EncoderPallas(img_size, num_patches, dim, key)
    x = jax.random.normal(k_x, (2, 3, img_size, img_size), dtype=jnp.float32)

    out = jax.block_until_ready(encoder(x))
    ref = jax.block_until_ready(_reference_forward(x, encoder.params))

    assert out.shape == (2, dim, num_patches, num_patches), out.shape
    np.testing.assert_allclose(np.asarray(out), np.asarray(ref), rtol=1e-4, atol=1e-4)

    print("KERNEL_OK")
</pallas_src>

<mosaic_0001>
module attributes {stable_mosaic.version = 11 : i64} {
  func.func @kernel(%arg0: i32, %arg1: memref<32x48xf32, #tpu.memory_space<vmem>>, %arg2: memref<48x32xf32, #tpu.memory_space<vmem>>, %arg3: memref<3x48x24xf32, #tpu.memory_space<vmem>>, %arg4: memref<1x24xf32, #tpu.memory_space<vmem>>, %arg5: memref<24x16xf32, #tpu.memory_space<vmem>>, %arg6: memref<3x24x128xf32, #tpu.memory_space<vmem>>, %arg7: memref<1x128xf32, #tpu.memory_space<vmem>>, %arg8: memref<8x128xf32, #tpu.memory_space<vmem>>) attributes {dimension_semantics = [#tpu.dimension_semantics<parallel>], iteration_bounds = array<i64: 1>, scalar_prefetch = 0 : i64, scratch_operands = 0 : i64, tpu.core_type = #tpu.core_type<tc>, window_params = [{transform_indices = @transform_0, window_bounds = array<i64: 32, 48>}, {pipeline_mode = #tpu.pipeline_mode<synchronous>, transform_indices = @transform_1, window_bounds = array<i64: 48, 32>}, {pipeline_mode = #tpu.pipeline_mode<synchronous>, transform_indices = @transform_2, window_bounds = array<i64: 3, 48, 24>}, {pipeline_mode = #tpu.pipeline_mode<synchronous>, transform_indices = @transform_3, window_bounds = array<i64: 1, 24>}, {pipeline_mode = #tpu.pipeline_mode<synchronous>, transform_indices = @transform_4, window_bounds = array<i64: 24, 16>}, {pipeline_mode = #tpu.pipeline_mode<synchronous>, transform_indices = @transform_5, window_bounds = array<i64: 3, 24, 128>}, {pipeline_mode = #tpu.pipeline_mode<synchronous>, transform_indices = @transform_6, window_bounds = array<i64: 1, 128>}, {transform_indices = @transform_7, window_bounds = array<i64: 8, 128>}]} {
    %c0 = arith.constant 0 : index
    %c0_0 = arith.constant 0 : index
    %0 = vector.load %arg1[%c0, %c0_0] : memref<32x48xf32, #tpu.memory_space<vmem>>, vector<32x48xf32>
    %c0_1 = arith.constant 0 : index
    %c0_2 = arith.constant 0 : index
    %1 = vector.load %arg2[%c0_1, %c0_2] : memref<48x32xf32, #tpu.memory_space<vmem>>, vector<48x32xf32>
    %cst = arith.constant dense<0.000000e+00> : vector<48x48xf32>
    %2 = tpu.matmul %1, %0, %cst {dimension_numbers = #tpu.dot_dimension_numbers<[1], [0], [0], [1], [0, 0, 1, 1], [], []>} : vector<48x32xf32>, vector<32x48xf32>, vector<48x48xf32> -> vector<48x48xf32>
    %c0_3 = arith.constant 0 : index
    %c0_4 = arith.constant 0 : index
    %3 = vector.load %arg4[%c0_3, %c0_4] : memref<1x24xf32, #tpu.memory_space<vmem>>, vector<1x24xf32>
    %4 = vector.extract_strided_slice %2 {offsets = [0, 0], sizes = [16, 48], strides = [1, 1]} : vector<48x48xf32> to vector<16x48xf32>
    %c0_5 = arith.constant 0 : index
    %c0_6 = arith.constant 0 : index
    %c0_7 = arith.constant 0 : index
    %5 = vector.load %arg3[%c0_5, %c0_6, %c0_7] : memref<3x48x24xf32, #tpu.memory_space<vmem>>, vector<1x48x24xf32>
    %6 = vector.shape_cast %5 : vector<1x48x24xf32> to vector<48x24xf32>
    %cst_8 = arith.constant dense<0.000000e+00> : vector<16x24xf32>
    %7 = tpu.matmul %4, %6, %cst_8 {dimension_numbers = #tpu.dot_dimension_numbers<[1], [0], [0], [1], [0, 0, 1, 1], [], []>} : vector<16x48xf32>, vector<48x24xf32>, vector<16x24xf32> -> vector<16x24xf32>
    %8 = vector.broadcast %3 : vector<1x24xf32> to vector<16x24xf32>
    %9 = arith.addf %8, %7 : vector<16x24xf32>
    %10 = vector.extract_strided_slice %2 {offsets = [16, 0], sizes = [16, 48], strides = [1, 1]} : vector<48x48xf32> to vector<16x48xf32>
    %c1 = arith.constant 1 : index
    %c0_9 = arith.constant 0 : index
    %c0_10 = arith.constant 0 : index
    %11 = vector.load %arg3[%c1, %c0_9, %c0_10] : memref<3x48x24xf32, #tpu.memory_space<vmem>>, vector<1x48x24xf32>
    %12 = vector.shape_cast %11 : vector<1x48x24xf32> to vector<48x24xf32>
    %cst_11 = arith.constant dense<0.000000e+00> : vector<16x24xf32>
    %13 = tpu.matmul %10, %12, %cst_11 {dimension_numbers = #tpu.dot_dimension_numbers<[1], [0], [0], [1], [0, 0, 1, 1], [], []>} : vector<16x48xf32>, vector<48x24xf32>, vector<16x24xf32> -> vector<16x24xf32>
    %14 = arith.addf %9, %13 : vector<16x24xf32>
    %15 = vector.extract_strided_slice %2 {offsets = [32, 0], sizes = [16, 48], strides = [1, 1]} : vector<48x48xf32> to vector<16x48xf32>
    %c2 = arith.constant 2 : index
    %c0_12 = arith.constant 0 : index
    %c0_13 = arith.constant 0 : index
    %16 = vector.load %arg3[%c2, %c0_12, %c0_13] : memref<3x48x24xf32, #tpu.memory_space<vmem>>, vector<1x48x24xf32>
    %17 = vector.shape_cast %16 : vector<1x48x24xf32> to vector<48x24xf32>
    %cst_14 = arith.constant dense<0.000000e+00> : vector<16x24xf32>
    %18 = tpu.matmul %15, %17, %cst_14 {dimension_numbers = #tpu.dot_dimension_numbers<[1], [0], [0], [1], [0, 0, 1, 1], [], []>} : vector<16x48xf32>, vector<48x24xf32>, vector<16x24xf32> -> vector<16x24xf32>
    %19 = arith.addf %14, %18 : vector<16x24xf32>
    %cst_15 = arith.constant 0.000000e+00 : f32
    %20 = vector.broadcast %cst_15 : f32 to vector<16x24xf32>
    %21 = arith.minimumf %19, %20 : vector<16x24xf32>
    %22 = math.exp %21 : vector<16x24xf32>
    %cst_16 = arith.constant 1.000000e+00 : f32
    %23 = vector.broadcast %cst_16 : f32 to vector<16x24xf32>
    %24 = arith.subf %22, %23 : vector<16x24xf32>
    %cst_17 = arith.constant 1.67326319 : f32
    %25 = vector.broadcast %cst_17 : f32 to vector<16x24xf32>
    %26 = arith.mulf %25, %24 : vector<16x24xf32>
    %cst_18 = arith.constant 0.000000e+00 : f32
    %27 = vector.broadcast %cst_18 : f32 to vector<16x24xf32>
    %28 = arith.cmpf ogt, %19, %27 : vector<16x24xf32>
    %29 = arith.select %28, %19, %26 : vector<16x24xi1>, vector<16x24xf32>
    %cst_19 = arith.constant 1.05070102 : f32
    %30 = vector.broadcast %cst_19 : f32 to vector<16x24xf32>
    %31 = arith.mulf %30, %29 : vector<16x24xf32>
    %c0_20 = arith.constant 0 : index
    %c0_21 = arith.constant 0 : index
    %32 = vector.load %arg5[%c0_20, %c0_21] : memref<24x16xf32, #tpu.memory_space<vmem>>, vector<24x16xf32>
    %cst_22 = arith.constant dense<0.000000e+00> : vector<24x24xf32>
    %33 = tpu.matmul %32, %31, %cst_22 {dimension_numbers = #tpu.dot_dimension_numbers<[1], [0], [0], [1], [0, 0, 1, 1], [], []>} : vector<24x16xf32>, vector<16x24xf32>, vector<24x24xf32> -> vector<24x24xf32>
    %c0_23 = arith.constant 0 : index
    %c0_24 = arith.constant 0 : index
    %34 = vector.load %arg7[%c0_23, %c0_24] : memref<1x128xf32, #tpu.memory_space<vmem>>, vector<1x128xf32>
    %35 = vector.extract_strided_slice %33 {offsets = [0, 0], sizes = [8, 24], strides = [1, 1]} : vector<24x24xf32> to vector<8x24xf32>
    %c0_25 = arith.constant 0 : index
    %c0_26 = arith.constant 0 : index
    %c0_27 = arith.constant 0 : index
    %36 = vector.load %arg6[%c0_25, %c0_26, %c0_27] : memref<3x24x128xf32, #tpu.memory_space<vmem>>, vector<1x24x128xf32>
    %37 = vector.shape_cast %36 : vector<1x24x128xf32> to vector<24x128xf32>
    %cst_28 = arith.constant dense<0.000000e+00> : vector<8x128xf32>
    %38 = tpu.matmul %35, %37, %cst_28 {dimension_numbers = #tpu.dot_dimension_numbers<[1], [0], [0], [1], [0, 0, 1, 1], [], []>} : vector<8x24xf32>, vector<24x128xf32>, vector<8x128xf32> -> vector<8x128xf32>
    %39 = vector.broadcast %34 : vector<1x128xf32> to vector<8x128xf32>
    %40 = arith.addf %39, %38 : vector<8x128xf32>
    %41 = vector.extract_strided_slice %33 {offsets = [8, 0], sizes = [8, 24], strides = [1, 1]} : vector<24x24xf32> to vector<8x24xf32>
    %c1_29 = arith.constant 1 : index
    %c0_30 = arith.constant 0 : index
    %c0_31 = arith.constant 0 : index
    %42 = vector.load %arg6[%c1_29, %c0_30, %c0_31] : memref<3x24x128xf32, #tpu.memory_space<vmem>>, vector<1x24x128xf32>
    %43 = vector.shape_cast %42 : vector<1x24x128xf32> to vector<24x128xf32>
    %cst_32 = arith.constant dense<0.000000e+00> : vector<8x128xf32>
    %44 = tpu.matmul %41, %43, %cst_32 {dimension_numbers = #tpu.dot_dimension_numbers<[1], [0], [0], [1], [0, 0, 1, 1], [], []>} : vector<8x24xf32>, vector<24x128xf32>, vector<8x128xf32> -> vector<8x128xf32>
    %45 = arith.addf %40, %44 : vector<8x128xf32>
    %46 = vector.extract_strided_slice %33 {offsets = [16, 0], sizes = [8, 24], strides = [1, 1]} : vector<24x24xf32> to vector<8x24xf32>
    %c2_33 = arith.constant 2 : index
    %c0_34 = arith.constant 0 : index
    %c0_35 = arith.constant 0 : index
    %47 = vector.load %arg6[%c2_33, %c0_34, %c0_35] : memref<3x24x128xf32, #tpu.memory_space<vmem>>, vector<1x24x128xf32>
    %48 = vector.shape_cast %47 : vector<1x24x128xf32> to vector<24x128xf32>
    %cst_36 = arith.constant dense<0.000000e+00> : vector<8x128xf32>
    %49 = tpu.matmul %46, %48, %cst_36 {dimension_numbers = #tpu.dot_dimension_numbers<[1], [0], [0], [1], [0, 0, 1, 1], [], []>} : vector<8x24xf32>, vector<24x128xf32>, vector<8x128xf32> -> vector<8x128xf32>
    %50 = arith.addf %45, %49 : vector<8x128xf32>
    %cst_37 = arith.constant 0.000000e+00 : f32
    %51 = vector.broadcast %cst_37 : f32 to vector<8x128xf32>
    %52 = arith.minimumf %50, %51 : vector<8x128xf32>
    %53 = math.exp %52 : vector<8x128xf32>
    %cst_38 = arith.constant 1.000000e+00 : f32
    %54 = vector.broadcast %cst_38 : f32 to vector<8x128xf32>
    %55 = arith.subf %53, %54 : vector<8x128xf32>
    %cst_39 = arith.constant 1.67326319 : f32
    %56 = vector.broadcast %cst_39 : f32 to vector<8x128xf32>
    %57 = arith.mulf %56, %55 : vector<8x128xf32>
    %cst_40 = arith.constant 0.000000e+00 : f32
    %58 = vector.broadcast %cst_40 : f32 to vector<8x128xf32>
    %59 = arith.cmpf ogt, %50, %58 : vector<8x128xf32>
    %60 = arith.select %59, %50, %57 : vector<8x128xi1>, vector<8x128xf32>
    %cst_41 = arith.constant 1.05070102 : f32
    %61 = vector.broadcast %cst_41 : f32 to vector<8x128xf32>
    %62 = arith.mulf %61, %60 : vector<8x128xf32>
    %c0_42 = arith.constant 0 : index
    %c0_43 = arith.constant 0 : index
    %63 = vector.load %arg8[%c0_42, %c0_43] : memref<8x128xf32, #tpu.memory_space<vmem>>, vector<8x128xf32>
    tpu.vector_store %arg8[%c0_42, %c0_43], %62 {strides = array<i32>} : memref<8x128xf32, #tpu.memory_space<vmem>>, vector<8x128xf32>,
    return
  }
  func.func @transform_0(%arg0: i32) -> (i32, i32) {
    %c0_i32 = arith.constant 0 : i32
    %c0_i32_0 = arith.constant 0 : i32
    return %arg0, %c0_i32 : i32, i32
  }
  func.func @transform_1(%arg0: i32) -> (i32, i32) {
    %c0_i32 = arith.constant 0 : i32
    %c0_i32_0 = arith.constant 0 : i32
    %c0_i32_1 = arith.constant 0 : i32
    return %c0_i32, %c0_i32_0 : i32, i32
  }
  func.func @transform_2(%arg0: i32) -> (i32, i32, i32) {
    %c0_i32 = arith.constant 0 : i32
    %c0_i32_0 = arith.constant 0 : i32
    %c0_i32_1 = arith.constant 0 : i32
    %c0_i32_2 = arith.constant 0 : i32
    return %c0_i32, %c0_i32_0, %c0_i32_1 : i32, i32, i32
  }
  func.func @transform_3(%arg0: i32) -> (i32, i32) {
    %c0_i32 = arith.constant 0 : i32
    %c0_i32_0 = arith.constant 0 : i32
    %c0_i32_1 = arith.constant 0 : i32
    return %c0_i32, %c0_i32_0 : i32, i32
  }
  func.func @transform_4(%arg0: i32) -> (i32, i32) {
    %c0_i32 = arith.constant 0 : i32
    %c0_i32_0 = arith.constant 0 : i32
    %c0_i32_1 = arith.constant 0 : i32
    return %c0_i32, %c0_i32_0 : i32, i32
  }
  func.func @transform_5(%arg0: i32) -> (i32, i32, i32) {
    %c0_i32 = arith.constant 0 : i32
    %c0_i32_0 = arith.constant 0 : i32
    %c0_i32_1 = arith.constant 0 : i32
    %c0_i32_2 = arith.constant 0 : i32
    return %c0_i32, %c0_i32_0, %c0_i32_1 : i32, i32, i32
  }
  func.func @transform_6(%arg0: i32) -> (i32, i32) {
    %c0_i32 = arith.constant 0 : i32
    %c0_i32_0 = arith.constant 0 : i32
    %c0_i32_1 = arith.constant 0 : i32
    return %c0_i32, %c0_i32_0 : i32, i32
  }
  func.func @transform_7(%arg0: i32) -> (i32, i32) {
    %c0_i32 = arith.constant 0 : i32
    %c0_i32_0 = arith.constant 0 : i32
    return %arg0, %c0_i32 : i32, i32
  }
}

</mosaic_0001>

<llo_original>
// kernel: _forward_impl.1
$region0: #{_forward_impl.1}
  #allocation0 [shape = 'u32[]', space=smem, size = 0x4, offset = 0x4, fixed_abs, tag = 'smem constant byte address 0x4 - core index']
  #allocation1 [shape = 'u32[144,128]{1,0:T(1,128)}', space=vmem, size = 0x12000, scoped, tag = 'internal scratch']
  %s0 = inlined_call_operand.vmem [shape: f32[32,48], index: 0, kind: input, shape index: {}]
  %s1 = inlined_call_operand.vmem [shape: f32[48,32], index: 1, kind: input, shape index: {}]
  %s2 = inlined_call_operand.vmem [shape: f32[3,48,24], index: 2, kind: input, shape index: {}]
  %s3 = inlined_call_operand.vmem [shape: f32[1,24], index: 3, kind: input, shape index: {}]
  %s4 = inlined_call_operand.vmem [shape: f32[24,16], index: 4, kind: input, shape index: {}]
  %s5 = inlined_call_operand.vmem [shape: f32[3,24,128], index: 5, kind: input, shape index: {}]
  %s6 = inlined_call_operand.vmem [shape: f32[1,128], index: 6, kind: input, shape index: {}]
  %s7 = inlined_call_operand.vmem [shape: f32[8,128], index: 7, kind: output, shape index: {}]
  %s8 = sld [smem:[#allocation0]]
  $region38: #{_forward_impl.1} parent=0
    _
  %s10 = ssub.s32 1, %s8
  %s11 = scalar_select 0, %s10, %s8
  // Predicated region
  $region2: #{_forward_impl.1} parent=0 // pred_check
    _
  $region3: #{_forward_impl.1} parent=0 // pred_check_branch
    %13 = sbr.rel (0) target = $region5
  $region4: #{_forward_impl.1} parent=0 // pred_region
    _
  $region5: #{_forward_impl.1} parent=0 // pred_fallthru
    _
  // Predicated region
  $region6: #{_forward_impl.1} parent=0 // pred_check
    _
  $region7: #{_forward_impl.1} parent=0 // pred_check_branch
    %15 = sbr.rel (0) target = $region9
  $region8: #{_forward_impl.1} parent=0 // pred_region
    _
  $region9: #{_forward_impl.1} parent=0 // pred_fallthru
    _
  // Predicated region
  $region10: #{_forward_impl.1} parent=0 // pred_check
    _
  $region11: #{_forward_impl.1} parent=0 // pred_check_branch
    %17 = sbr.rel (0) target = $region13
  $region12: #{_forward_impl.1} parent=0 // pred_region
    _
  $region13: #{_forward_impl.1} parent=0 // pred_fallthru
    _
  // Predicated region
  $region14: #{_forward_impl.1} parent=0 // pred_check
    _
  $region15: #{_forward_impl.1} parent=0 // pred_check_branch
    %19 = sbr.rel (0) target = $region17
  $region16: #{_forward_impl.1} parent=0 // pred_region
    _
  $region17: #{_forward_impl.1} parent=0 // pred_fallthru
    _
  // Predicated region
  $region18: #{_forward_impl.1} parent=0 // pred_check
    _
  $region19: #{_forward_impl.1} parent=0 // pred_check_branch
    %21 = sbr.rel (0) target = $region21
  $region20: #{_forward_impl.1} parent=0 // pred_region
    _
  $region21: #{_forward_impl.1} parent=0 // pred_fallthru
    _
  // Predicated region
  $region22: #{_forward_impl.1} parent=0 // pred_check
    _
  $region23: #{_forward_impl.1} parent=0 // pred_check_branch
    %23 = sbr.rel (0) target = $region25
  $region24: #{_forward_impl.1} parent=0 // pred_region
    _
  $region25: #{_forward_impl.1} parent=0 // pred_fallthru
    _
  // Predicated region
  $region26: #{_forward_impl.1} parent=0 // pred_check
    _
  $region27: #{_forward_impl.1} parent=0 // pred_check_branch
    %25 = sbr.rel (0) target = $region29
  $region28: #{_forward_impl.1} parent=0 // pred_region
    _
  $region29: #{_forward_impl.1} parent=0 // pred_fallthru
    _
  %v26 = vld [vmem:[%s0] sm:$0xff]
  %v27 = vld [vmem:[%s0 + $0x8] sm:$0xff]
  %v28 = vld [vmem:[%s0 + $0x10] sm:$0xff]
  %v29 = vld [vmem:[%s0 + $0x18] sm:$0xff]
  %v30 = vld [vmem:[%s1] sm:$0xff]
  %v31 = vld [vmem:[%s1 + $0x8] sm:$0xff]
  %v32 = vld [vmem:[%s1 + $0x10] sm:$0xff]
  %v33 = vld [vmem:[%s1 + $0x18] sm:$0xff]
  %v34 = vld [vmem:[%s1 + $0x20] sm:$0xff]
  %v35 = vld [vmem:[%s1 + $0x28] sm:$0xff]
  %vm36 = vcmask 261120
  %v38 = vsel %vm36, %v30, 0
  %v41 = vsel %vm36, %v31, 0
  %v44 = vsel %vm36, %v32, 0
  %v47 = vsel %vm36, %v33, 0
  %v50 = vsel %vm36, %v34, 0
  %v53 = vsel %vm36, %v35, 0
  %55 = vmatprep.subr.mxu0 0.0
  %56 = vmatpush1.msra.mxu0 0.0
  %57 = vmatprep.subr.mxu0 0.0
  %58 = vmatpush1.msra.mxu0 0.0
  %59 = vmatprep.subr.mxu0 0.0
  %60 = vmatpush1.msra.mxu0 0.0
  %61 = vmatprep.subr.mxu0 0.0
  %62 = vmatpush1.msra.mxu0 0.0
  %63 = vmatprep.subr.mxu0 0.0
  %64 = vmatpush1.msra.mxu0 0.0
  %65 = vmatprep.subr.mxu0 0.0
  %66 = vmatpush1.msra.mxu0 0.0
  %67 = vmatprep.subr.mxu0 0.0
  %68 = vmatpush1.msra.mxu0 0.0
  %69 = vmatprep.subr.mxu0 0.0
  %70 = vmatpush1.msra.mxu0 0.0
  %71 = vmatprep.subr.mxu0 0.0
  %72 = vmatpush1.msra.mxu0 0.0
  %73 = vmatprep.subr.mxu0 0.0
  %74 = vmatpush1.msra.mxu0 0.0
  %75 = vmatprep.subr.mxu0 0.0
  %76 = vmatpush1.msra.mxu0 0.0
  %77 = vmatprep.subr.mxu0 0.0
  %78 = vmatpush1.msra.mxu0 0.0
  %79 = vmatprep.subr.mxu0 0.0
  %80 = vmatpush1.msra.mxu0 %v29
  %81 = vmatprep.subr.mxu0 0.0
  %82 = vmatpush1.msra.mxu0 %v28
  %83 = vmatprep.subr.mxu0 0.0
  %84 = vmatpush1.msra.mxu0 %v27
  %85 = vmatprep.subr.mxu0 0.0
  %86 = vmatpush1.msra.mxu0 %v26
  %87 = vmatprep.subr.mxu0 0.0
  %88 = vmatpush2.msra.mxu0 0.0
  %89 = vmatprep.subr.mxu0 0.0
  %90 = vmatpush2.msra.mxu0 0.0
  %91 = vmatprep.subr.mxu0 0.0
  %92 = vmatpush2.msra.mxu0 0.0
  %93 = vmatprep.subr.mxu0 0.0
  %94 = vmatpush2.msra.mxu0 0.0
  %95 = vmatprep.subr.mxu0 0.0
  %96 = vmatpush2.msra.mxu0 0.0
  %97 = vmatprep.subr.mxu0 0.0
  %98 = vmatpush2.msra.mxu0 0.0
  %99 = vmatprep.subr.mxu0 0.0
  %100 = vmatpush2.msra.mxu0 0.0
  %101 = vmatprep.subr.mxu0 0.0
  %102 = vmatpush2.msra.mxu0 0.0
  %103 = vmatprep.subr.mxu0 0.0
  %104 = vmatpush2.msra.mxu0 0.0
  %105 = vmatprep.subr.mxu0 0.0
  %106 = vmatpush2.msra.mxu0 0.0
  %107 = vmatprep.subr.mxu0 0.0
  %108 = vmatpush2.msra.mxu0 0.0
  %109 = vmatprep.subr.mxu0 0.0
  %110 = vmatpush2.msra.mxu0 0.0
  %111 = vmatprep.subr.mxu0 0.0
  %112 = vmatpush2.msra.mxu0 0.0
  %113 = vmatprep.subr.mxu0 0.0
  %114 = vmatpush2.msra.mxu0 0.0
  %115 = vmatprep.subr.mxu0 0.0
  %116 = vmatpush2.msra.mxu0 0.0
  %117 = vmatprep.subr.mxu0 0.0
  %118 = vmatpush2.msra.mxu0 0.0
  %119 = vmatprep.mubr.f32.mxu0 0.0
  %120 = vmatmul.mubr.f32.gmra.mxu0 %v38
  %v121 = vpop.f32.mrf.mxu0
  %v122 = vadd.f32 0.0, %v121
  %v123 = vpop.f32.mrf.mxu0
  %124 = vmatprep.mubr.f32.mxu0 0.0
  %125 = vmatmul.mubr.f32.gmra.mxu0 %v41
  %v126 = vpop.f32.mrf.mxu0
  %v127 = vadd.f32 0.0, %v126
  %v128 = vpop.f32.mrf.mxu0
  %129 = vmatprep.mubr.f32.mxu0 0.0
  %130 = vmatmul.mubr.f32.gmra.mxu0 %v44
  %v131 = vpop.f32.mrf.mxu0
  %v132 = vadd.f32 0.0, %v131
  %v133 = vpop.f32.mrf.mxu0
  %134 = vmatprep.mubr.f32.mxu0 0.0
  %135 = vmatmul.mubr.f32.gmra.mxu0 %v47
  %v136 = vpop.f32.mrf.mxu0
  %v137 = vadd.f32 0.0, %v136
  %v138 = vpop.f32.mrf.mxu0
  %139 = vmatprep.mubr.f32.mxu0 0.0
  %140 = vmatmul.mubr.f32.gmra.mxu0 %v50
  %v141 = vpop.f32.mrf.mxu0
  %v142 = vadd.f32 0.0, %v141
  %v143 = vpop.f32.mrf.mxu0
  %144 = vmatprep.mubr.f32.mxu0 0.0
  %145 = vmatmul.mubr.f32.gmra.mxu0 %v53
  %v146 = vpop.f32.mrf.mxu0
  %v147 = vadd.f32 0.0, %v146
  %v148 = vpop.f32.mrf.mxu0
  %149 = vdwg.mxu0
  %v150 = vld [vmem:[%s3] sm:$0x1]
  %v151 = vld [vmem:[%s2] sm:$0xff]
  %v152 = vld [vmem:[%s2 + $0x8] sm:$0xff]
  %v153 = vld [vmem:[%s2 + $0x10] sm:$0xff]
  %v154 = vld [vmem:[%s2 + $0x18] sm:$0xff]
  %v155 = vld [vmem:[%s2 + $0x20] sm:$0xff]
  %v156 = vld [vmem:[%s2 + $0x28] sm:$0xff]
  %vm157 = vcmask 392192
  %v159 = vsel %vm157, %v122, 0
  %v162 = vsel %vm157, %v127, 0
  %164 = vmatprep.subr.mxu0 0.0
  %165 = vmatpush1.msra.mxu0 0.0
  %166 = vmatprep.subr.mxu0 0.0
  %167 = vmatpush1.msra.mxu0 0.0
  %168 = vmatprep.subr.mxu0 0.0
  %169 = vmatpush1.msra.mxu0 0.0
  %170 = vmatprep.subr.mxu0 0.0
  %171 = vmatpush1.msra.mxu0 0.0
  %172 = vmatprep.subr.mxu0 0.0
  %173 = vmatpush1.msra.mxu0 0.0
  %174 = vmatprep.subr.mxu0 0.0
  %175 = vmatpush1.msra.mxu0 0.0
  %176 = vmatprep.subr.mxu0 0.0
  %177 = vmatpush1.msra.mxu0 0.0
  %178 = vmatprep.subr.mxu0 0.0
  %179 = vmatpush1.msra.mxu0 0.0
  %180 = vmatprep.subr.mxu0 0.0
  %181 = vmatpush1.msra.mxu0 0.0
  %182 = vmatprep.subr.mxu0 0.0
  %183 = vmatpush1.msra.mxu0 0.0
  %184 = vmatprep.subr.mxu0 0.0
  %185 = vmatpush1.msra.mxu0 %v156
  %186 = vmatprep.subr.mxu0 0.0
  %187 = vmatpush1.msra.mxu0 %v155
  %188 = vmatprep.subr.mxu0 0.0
  %189 = vmatpush1.msra.mxu0 %v154
  %190 = vmatprep.subr.mxu0 0.0
  %191 = vmatpush1.msra.mxu0 %v153
  %192 = vmatprep.subr.mxu0 0.0
  %193 = vmatpush1.msra.mxu0 %v152
  %194 = vmatprep.subr.mxu0 0.0
  %195 = vmatpush1.msra.mxu0 %v151
  %196 = vmatprep.subr.mxu0 0.0
  %197 = vmatpush2.msra.mxu0 0.0
  %198 = vmatprep.subr.mxu0 0.0
  %199 = vmatpush2.msra.mxu0 0.0
  %200 = vmatprep.subr.mxu0 0.0
  %201 = vmatpush2.msra.mxu0 0.0
  %202 = vmatprep.subr.mxu0 0.0
  %203 = vmatpush2.msra.mxu0 0.0
  %204 = vmatprep.subr.mxu0 0.0
  %205 = vmatpush2.msra.mxu0 0.0
  %206 = vmatprep.subr.mxu0 0.0
  %207 = vmatpush2.msra.mxu0 0.0
  %208 = vmatprep.subr.mxu0 0.0
  %209 = vmatpush2.msra.mxu0 0.0
  %210 = vmatprep.subr.mxu0 0.0
  %211 = vmatpush2.msra.mxu0 0.0
  %212 = vmatprep.subr.mxu0 0.0
  %213 = vmatpush2.msra.mxu0 0.0
  %214 = vmatprep.subr.mxu0 0.0
  %215 = vmatpush2.msra.mxu0 0.0
  %216 = vmatprep.subr.mxu0 0.0
  %217 = vmatpush2.msra.mxu0 0.0
  %218 = vmatprep.subr.mxu0 0.0
  %219 = vmatpush2.msra.mxu0 0.0
  %220 = vmatprep.subr.mxu0 0.0
  %221 = vmatpush2.msra.mxu0 0.0
  %222 = vmatprep.subr.mxu0 0.0
  %223 = vmatpush2.msra.mxu0 0.0
  %224 = vmatprep.subr.mxu0 0.0
  %225 = vmatpush2.msra.mxu0 0.0
  %226 = vmatprep.subr.mxu0 0.0
  %227 = vmatpush2.msra.mxu0 0.0
  %228 = vmatprep.mubr.f32.mxu0 0.0
  %229 = vmatmul.mubr.f32.gmra.mxu0 %v159
  %v230 = vpop.f32.mrf.mxu0
  %v231 = vadd.f32 0.0, %v230
  %v232 = vpop.f32.mrf.mxu0
  %233 = vmatprep.mubr.f32.mxu0 0.0
  %234 = vmatmul.mubr.f32.gmra.mxu0 %v162
  %v235 = vpop.f32.mrf.mxu0
  %v236 = vadd.f32 0.0, %v235
  %v237 = vpop.f32.mrf.mxu0
  %238 = vdwg.mxu0
  %v240 = vlaneseq
  %v241 = vshrl.u32 %v240, 7
  %v242 = vsub.s32 0, %v241
  %v243 = vrot.slane %v150, %v242
  %v245 = vadd.f32 %v243, %v231
  %v246 = vadd.f32 %v243, %v236
  %s247 = scalar_lea.vmem %s2, 48
  %v248 = vld [vmem:[%s247] sm:$0xff]
  %v249 = vld [vmem:[%s247 + $0x8] sm:$0xff]
  %v250 = vld [vmem:[%s247 + $0x10] sm:$0xff]
  %v251 = vld [vmem:[%s247 + $0x18] sm:$0xff]
  %v252 = vld [vmem:[%s247 + $0x20] sm:$0xff]
  %v253 = vld [vmem:[%s247 + $0x28] sm:$0xff]
  %v255 = vsel %vm157, %v132, 0
  %v258 = vsel %vm157, %v137, 0
  %260 = vmatprep.subr.mxu0 0.0
  %261 = vmatpush1.msra.mxu0 0.0
  %262 = vmatprep.subr.mxu0 0.0
  %263 = vmatpush1.msra.mxu0 0.0
  %264 = vmatprep.subr.mxu0 0.0
  %265 = vmatpush1.msra.mxu0 0.0
  %266 = vmatprep.subr.mxu0 0.0
  %267 = vmatpush1.msra.mxu0 0.0
  %268 = vmatprep.subr.mxu0 0.0
  %269 = vmatpush1.msra.mxu0 0.0
  %270 = vmatprep.subr.mxu0 0.0
  %271 = vmatpush1.msra.mxu0 0.0
  %272 = vmatprep.subr.mxu0 0.0
  %273 = vmatpush1.msra.mxu0 0.0
  %274 = vmatprep.subr.mxu0 0.0
  %275 = vmatpush1.msra.mxu0 0.0
  %276 = vmatprep.subr.mxu0 0.0
  %277 = vmatpush1.msra.mxu0 0.0
  %278 = vmatprep.subr.mxu0 0.0
  %279 = vmatpush1.msra.mxu0 0.0
  %280 = vmatprep.subr.mxu0 0.0
  %281 = vmatpush1.msra.mxu0 %v253
  %282 = vmatprep.subr.mxu0 0.0
  %283 = vmatpush1.msra.mxu0 %v252
  %284 = vmatprep.subr.mxu0 0.0
  %285 = vmatpush1.msra.mxu0 %v251
  %286 = vmatprep.subr.mxu0 0.0
  %287 = vmatpush1.msra.mxu0 %v250
  %288 = vmatprep.subr.mxu0 0.0
  %289 = vmatpush1.msra.mxu0 %v249
  %290 = vmatprep.subr.mxu0 0.0
  %291 = vmatpush1.msra.mxu0 %v248
  %292 = vmatprep.subr.mxu0 0.0
  %293 = vmatpush2.msra.mxu0 0.0
  %294 = vmatprep.subr.mxu0 0.0
  %295 = vmatpush2.msra.mxu0 0.0
  %296 = vmatprep.subr.mxu0 0.0
  %297 = vmatpush2.msra.mxu0 0.0
  %298 = vmatprep.subr.mxu0 0.0
  %299 = vmatpush2.msra.mxu0 0.0
  %300 = vmatprep.subr.mxu0 0.0
  %301 = vmatpush2.msra.mxu0 0.0
  %302 = vmatprep.subr.mxu0 0.0
  %303 = vmatpush2.msra.mxu0 0.0
  %304 = vmatprep.subr.mxu0 0.0
  %305 = vmatpush2.msra.mxu0 0.0
  %306 = vmatprep.subr.mxu0 0.0
  %307 = vmatpush2.msra.mxu0 0.0
  %308 = vmatprep.subr.mxu0 0.0
  %309 = vmatpush2.msra.mxu0 0.0
  %310 = vmatprep.subr.mxu0 0.0
  %311 = vmatpush2.msra.mxu0 0.0
  %312 = vmatprep.subr.mxu0 0.0
  %313 = vmatpush2.msra.mxu0 0.0
  %314 = vmatprep.subr.mxu0 0.0
  %315 = vmatpush2.msra.mxu0 0.0
  %316 = vmatprep.subr.mxu0 0.0
  %317 = vmatpush2.msra.mxu0 0.0
  %318 = vmatprep.subr.mxu0 0.0
  %319 = vmatpush2.msra.mxu0 0.0
  %320 = vmatprep.subr.mxu0 0.0
  %321 = vmatpush2.msra.mxu0 0.0
  %322 = vmatprep.subr.mxu0 0.0
  %323 = vmatpush2.msra.mxu0 0.0
  %324 = vmatprep.mubr.f32.mxu0 0.0
  %325 = vmatmul.mubr.f32.gmra.mxu0 %v255
  %v326 = vpop.f32.mrf.mxu0
  %v327 = vadd.f32 0.0, %v326
  %v328 = vpop.f32.mrf.mxu0
  %329 = vmatprep.mubr.f32.mxu0 0.0
  %330 = vmatmul.mubr.f32.gmra.mxu0 %v258
  %v331 = vpop.f32.mrf.mxu0
  %v332 = vadd.f32 0.0, %v331
  %v333 = vpop.f32.mrf.mxu0
  %334 = vdwg.mxu0
  %v335 = vadd.f32 %v245, %v327
  %v336 = vadd.f32 %v246, %v332
  %s337 = scalar_lea.vmem %s2, 96
  %v338 = vld [vmem:[%s337] sm:$0xff]
  %v339 = vld [vmem:[%s337 + $0x8] sm:$0xff]
  %v340 = vld [vmem:[%s337 + $0x10] sm:$0xff]
  %v341 = vld [vmem:[%s337 + $0x18] sm:$0xff]
  %v342 = vld [vmem:[%s337 + $0x20] sm:$0xff]
  %v343 = vld [vmem:[%s337 + $0x28] sm:$0xff]
  %v345 = vsel %vm157, %v142, 0
  %v348 = vsel %vm157, %v147, 0
  %350 = vmatprep.subr.mxu0 0.0
  %351 = vmatpush1.msra.mxu0 0.0
  %352 = vmatprep.subr.mxu0 0.0
  %353 = vmatpush1.msra.mxu0 0.0
  %354 = vmatprep.subr.mxu0 0.0
  %355 = vmatpush1.msra.mxu0 0.0
  %356 = vmatprep.subr.mxu0 0.0
  %357 = vmatpush1.msra.mxu0 0.0
  %358 = vmatprep.subr.mxu0 0.0
  %359 = vmatpush1.msra.mxu0 0.0
  %360 = vmatprep.subr.mxu0 0.0
  %361 = vmatpush1.msra.mxu0 0.0
  %362 = vmatprep.subr.mxu0 0.0
  %363 = vmatpush1.msra.mxu0 0.0
  %364 = vmatprep.subr.mxu0 0.0
  %365 = vmatpush1.msra.mxu0 0.0
  %366 = vmatprep.subr.mxu0 0.0
  %367 = vmatpush1.msra.mxu0 0.0
  %368 = vmatprep.subr.mxu0 0.0
  %369 = vmatpush1.msra.mxu0 0.0
  %370 = vmatprep.subr.mxu0 0.0
  %371 = vmatpush1.msra.mxu0 %v343
  %372 = vmatprep.subr.mxu0 0.0
  %373 = vmatpush1.msra.mxu0 %v342
  %374 = vmatprep.subr.mxu0 0.0
  %375 = vmatpush1.msra.mxu0 %v341
  %376 = vmatprep.subr.mxu0 0.0
  %377 = vmatpush1.msra.mxu0 %v340
  %378 = vmatprep.subr.mxu0 0.0
  %379 = vmatpush1.msra.mxu0 %v339
  %380 = vmatprep.subr.mxu0 0.0
  %381 = vmatpush1.msra.mxu0 %v338
  %382 = vmatprep.subr.mxu0 0.0
  %383 = vmatpush2.msra.mxu0 0.0
  %384 = vmatprep.subr.mxu0 0.0
  %385 = vmatpush2.msra.mxu0 0.0
  %386 = vmatprep.subr.mxu0 0.0
  %387 = vmatpush2.msra.mxu0 0.0
  %388 = vmatprep.subr.mxu0 0.0
  %389 = vmatpush2.msra.mxu0 0.0
  %390 = vmatprep.subr.mxu0 0.0
  %391 = vmatpush2.msra.mxu0 0.0
  %392 = vmatprep.subr.mxu0 0.0
  %393 = vmatpush2.msra.mxu0 0.0
  %394 = vmatprep.subr.mxu0 0.0
  %395 = vmatpush2.msra.mxu0 0.0
  %396 = vmatprep.subr.mxu0 0.0
  %397 = vmatpush2.msra.mxu0 0.0
  %398 = vmatprep.subr.mxu0 0.0
  %399 = vmatpush2.msra.mxu0 0.0
  %400 = vmatprep.subr.mxu0 0.0
  %401 = vmatpush2.msra.mxu0 0.0
  %402 = vmatprep.subr.mxu0 0.0
  %403 = vmatpush2.msra.mxu0 0.0
  %404 = vmatprep.subr.mxu0 0.0
  %405 = vmatpush2.msra.mxu0 0.0
  %406 = vmatprep.subr.mxu0 0.0
  %407 = vmatpush2.msra.mxu0 0.0
  %408 = vmatprep.subr.mxu0 0.0
  %409 = vmatpush2.msra.mxu0 0.0
  %410 = vmatprep.subr.mxu0 0.0
  %411 = vmatpush2.msra.mxu0 0.0
  %412 = vmatprep.subr.mxu0 0.0
  %413 = vmatpush2.msra.mxu0 0.0
  %414 = vmatprep.mubr.f32.mxu0 0.0
  %415 = vmatmul.mubr.f32.gmra.mxu0 %v345
  %v416 = vpop.f32.mrf.mxu0
  %v417 = vadd.f32 0.0, %v416
  %v418 = vpop.f32.mrf.mxu0
  %419 = vmatprep.mubr.f32.mxu0 0.0
  %420 = vmatmul.mubr.f32.gmra.mxu0 %v348
  %v421 = vpop.f32.mrf.mxu0
  %v422 = vadd.f32 0.0, %v421
  %v423 = vpop.f32.mrf.mxu0
  %424 = vdwg.mxu0
  %v425 = vadd.f32 %v335, %v417
  %v426 = vadd.f32 %v336, %v422
  %v427 = vmin.f32 %v425, 0.0
  %v428 = vmin.f32 %v426, 0.0
  %v429 = vmul.f32 %v427, 1.442695
  %v430 = vpow.pop %v429
  %v431 = vmul.f32 %v428, 1.442695
  %v432 = vpow.pop %v431
  %v433 = vsub.f32 %v430, 1.0
  %v434 = vsub.f32 %v432, 1.0
  %v435 = vmul.f32 %v433, 1.6732632
  %v436 = vmul.f32 %v434, 1.6732632
  %vm437 = vcmp.gt.f32.partialorder %v425, 0.0
  %vm438 = vcmp.gt.f32.partialorder %v426, 0.0
  %v439 = vsel %vm437, %v425, %v435
  %v440 = vsel %vm438, %v426, %v436
  %v441 = vmul.f32 %v439, 1.050701
  %v442 = vmul.f32 %v440, 1.050701
  %v443 = vld [vmem:[%s4] sm:$0xff]
  %v444 = vld [vmem:[%s4 + $0x8] sm:$0xff]
  %v445 = vld [vmem:[%s4 + $0x10] sm:$0xff]
  %vm446 = vcmask 130048
  %v448 = vsel %vm446, %v443, 0
  %v451 = vsel %vm446, %v444, 0
  %v454 = vsel %vm446, %v445, 0
  %456 = vmatprep.subr.mxu0 0.0
  %457 = vmatpush1.msra.mxu0 0.0
  %458 = vmatprep.subr.mxu0 0.0
  %459 = vmatpush1.msra.mxu0 0.0
  %460 = vmatprep.subr.mxu0 0.0
  %461 = vmatpush1.msra.mxu0 0.0
  %462 = vmatprep.subr.mxu0 0.0
  %463 = vmatpush1.msra.mxu0 0.0
  %464 = vmatprep.subr.mxu0 0.0
  %465 = vmatpush1.msra.mxu0 0.0
  %466 = vmatprep.subr.mxu0 0.0
  %467 = vmatpush1.msra.mxu0 0.0
  %468 = vmatprep.subr.mxu0 0.0
  %469 = vmatpush1.msra.mxu0 0.0
  %470 = vmatprep.subr.mxu0 0.0
  %471 = vmatpush1.msra.mxu0 0.0
  %472 = vmatprep.subr.mxu0 0.0
  %473 = vmatpush1.msra.mxu0 0.0
  %474 = vmatprep.subr.mxu0 0.0
  %475 = vmatpush1.msra.mxu0 0.0
  %476 = vmatprep.subr.mxu0 0.0
  %477 = vmatpush1.msra.mxu0 0.0
  %478 = vmatprep.subr.mxu0 0.0
  %479 = vmatpush1.msra.mxu0 0.0
  %480 = vmatprep.subr.mxu0 0.0
  %481 = vmatpush1.msra.mxu0 0.0
  %482 = vmatprep.subr.mxu0 0.0
  %483 = vmatpush1.msra.mxu0 0.0
  %484 = vmatprep.subr.mxu0 0.0
  %485 = vmatpush1.msra.mxu0 %v442
  %486 = vmatprep.subr.mxu0 0.0
  %487 = vmatpush1.msra.mxu0 %v441
  %488 = vmatprep.subr.mxu0 0.0
  %489 = vmatpush2.msra.mxu0 0.0
  %490 = vmatprep.subr.mxu0 0.0
  %491 = vmatpush2.msra.mxu0 0.0
  %492 = vmatprep.subr.mxu0 0.0
  %493 = vmatpush2.msra.mxu0 0.0
  %494 = vmatprep.subr.mxu0 0.0
  %495 = vmatpush2.msra.mxu0 0.0
  %496 = vmatprep.subr.mxu0 0.0
  %497 = vmatpush2.msra.mxu0 0.0
  %498 = vmatprep.subr.mxu0 0.0
  %499 = vmatpush2.msra.mxu0 0.0
  %500 = vmatprep.subr.mxu0 0.0
  %501 = vmatpush2.msra.mxu0 0.0
  %502 = vmatprep.subr.mxu0 0.0
  %503 = vmatpush2.msra.mxu0 0.0
  %504 = vmatprep.subr.mxu0 0.0
  %505 = vmatpush2.msra.mxu0 0.0
  %506 = vmatprep.subr.mxu0 0.0
  %507 = vmatpush2.msra.mxu0 0.0
  %508 = vmatprep.subr.mxu0 0.0
  %509 = vmatpush2.msra.mxu0 0.0
  %510 = vmatprep.subr.mxu0 0.0
  %511 = vmatpush2.msra.mxu0 0.0
  %512 = vmatprep.subr.mxu0 0.0
  %513 = vmatpush2.msra.mxu0 0.0
  %514 = vmatprep.subr.mxu0 0.0
  %515 = vmatpush2.msra.mxu0 0.0
  %516 = vmatprep.subr.mxu0 0.0
  %517 = vmatpush2.msra.mxu0 0.0
  %518 = vmatprep.subr.mxu0 0.0
  %519 = vmatpush2.msra.mxu0 0.0
  %520 = vmatprep.mubr.f32.mxu0 0.0
  %521 = vmatmul.mubr.f32.gmra.mxu0 %v448
  %v522 = vpop.f32.mrf.mxu0
  %v523 = vadd.f32 0.0, %v522
  %v524 = vpop.f32.mrf.mxu0
  %525 = vmatprep.mubr.f32.mxu0 0.0
  %526 = vmatmul.mubr.f32.gmra.mxu0 %v451
  %v527 = vpop.f32.mrf.mxu0
  %v528 = vadd.f32 0.0, %v527
  %v529 = vpop.f32.mrf.mxu0
  %530 = vmatprep.mubr.f32.mxu0 0.0
  %531 = vmatmul.mubr.f32.gmra.mxu0 %v454
  %v532 = vpop.f32.mrf.mxu0
  %v533 = vadd.f32 0.0, %v532
  %v534 = vpop.f32.mrf.mxu0
  %535 = vdwg.mxu0
  %v536 = vld [vmem:[%s6] sm:$0x1]
  %v537 = vld [vmem:[%s5] sm:$0xff]
  %v538 = vld [vmem:[%s5 + $0x8] sm:$0xff]
  %v539 = vld [vmem:[%s5 + $0x10] sm:$0xff]
  %vm540 = vcmask 195584
  %v542 = vsel %vm540, %v523, 0
  %544 = vmatprep.subr.mxu0 0.0
  %545 = vmatpush1.msra.mxu0 0.0
  %546 = vmatprep.subr.mxu0 0.0
  %547 = vmatpush1.msra.mxu0 0.0
  %548 = vmatprep.subr.mxu0 0.0
  %549 = vmatpush1.msra.mxu0 0.0
  %550 = vmatprep.subr.mxu0 0.0
  %551 = vmatpush1.msra.mxu0 0.0
  %552 = vmatprep.subr.mxu0 0.0
  %553 = vmatpush1.msra.mxu0 0.0
  %554 = vmatprep.subr.mxu0 0.0
  %555 = vmatpush1.msra.mxu0 0.0
  %556 = vmatprep.subr.mxu0 0.0
  %557 = vmatpush1.msra.mxu0 0.0
  %558 = vmatprep.subr.mxu0 0.0
  %559 = vmatpush1.msra.mxu0 0.0
  %560 = vmatprep.subr.mxu0 0.0
  %561 = vmatpush1.msra.mxu0 0.0
  %562 = vmatprep.subr.mxu0 0.0
  %563 = vmatpush1.msra.mxu0 0.0
  %564 = vmatprep.subr.mxu0 0.0
  %565 = vmatpush1.msra.mxu0 0.0
  %566 = vmatprep.subr.mxu0 0.0
  %567 = vmatpush1.msra.mxu0 0.0
  %568 = vmatprep.subr.mxu0 0.0
  %569 = vmatpush1.msra.mxu0 0.0
  %570 = vmatprep.subr.mxu0 0.0
  %571 = vmatpush1.msra.mxu0 %v539
  %572 = vmatprep.subr.mxu0 0.0
  %573 = vmatpush1.msra.mxu0 %v538
  %574 = vmatprep.subr.mxu0 0.0
  %575 = vmatpush1.msra.mxu0 %v537
  %576 = vmatprep.subr.mxu0 0.0
  %577 = vmatpush2.msra.mxu0 0.0
  %578 = vmatprep.subr.mxu0 0.0
  %579 = vmatpush2.msra.mxu0 0.0
  %580 = vmatprep.subr.mxu0 0.0
  %581 = vmatpush2.msra.mxu0 0.0
  %582 = vmatprep.subr.mxu0 0.0
  %583 = vmatpush2.msra.mxu0 0.0
  %584 = vmatprep.subr.mxu0 0.0
  %585 = vmatpush2.msra.mxu0 0.0
  %586 = vmatprep.subr.mxu0 0.0
  %587 = vmatpush2.msra.mxu0 0.0
  %588 = vmatprep.subr.mxu0 0.0
  %589 = vmatpush2.msra.mxu0 0.0
  %590 = vmatprep.subr.mxu0 0.0
  %591 = vmatpush2.msra.mxu0 0.0
  %592 = vmatprep.subr.mxu0 0.0
  %593 = vmatpush2.msra.mxu0 0.0
  %594 = vmatprep.subr.mxu0 0.0
  %595 = vmatpush2.msra.mxu0 0.0
  %596 = vmatprep.subr.mxu0 0.0
  %597 = vmatpush2.msra.mxu0 0.0
  %598 = vmatprep.subr.mxu0 0.0
  %599 = vmatpush2.msra.mxu0 0.0
  %600 = vmatprep.subr.mxu0 0.0
  %601 = vmatpush2.msra.mxu0 0.0
  %602 = vmatprep.subr.mxu0 0.0
  %603 = vmatpush2.msra.mxu0 0.0
  %604 = vmatprep.subr.mxu0 0.0
  %605 = vmatpush2.msra.mxu0 0.0
  %606 = vmatprep.subr.mxu0 0.0
  %607 = vmatpush2.msra.mxu0 0.0
  %608 = vmatprep.mubr.f32.mxu0 0.0
  %609 = vmatmul.mubr.f32.gmra.mxu0 %v542
  %v610 = vpop.f32.mrf.mxu0
  %v611 = vadd.f32 0.0, %v610
  %v612 = vpop.f32.mrf.mxu0
  %613 = vdwg.mxu0
  %v615 = vlaneseq
  %v616 = vshrl.u32 %v615, 7
  %v617 = vsub.s32 0, %v616
  %v618 = vrot.slane %v536, %v617
  %v620 = vadd.f32 %v618, %v611
  %s621 = scalar_lea.vmem %s5, 24
  %v622 = vld [vmem:[%s621] sm:$0xff]
  %v623 = vld [vmem:[%s621 + $0x8] sm:$0xff]
  %v624 = vld [vmem:[%s621 + $0x10] sm:$0xff]
  %v626 = vsel %vm540, %v528, 0
  %628 = vmatprep.subr.mxu0 0.0
  %629 = vmatpush1.msra.mxu0 0.0
  %630 = vmatprep.subr.mxu0 0.0
  %631 = vmatpush1.msra.mxu0 0.0
  %632 = vmatprep.subr.mxu0 0.0
  %633 = vmatpush1.msra.mxu0 0.0
  %634 = vmatprep.subr.mxu0 0.0
  %635 = vmatpush1.msra.mxu0 0.0
  %636 = vmatprep.subr.mxu0 0.0
  %637 = vmatpush1.msra.mxu0 0.0
  %638 = vmatprep.subr.mxu0 0.0
  %639 = vmatpush1.msra.mxu0 0.0
  %640 = vmatprep.subr.mxu0 0.0
  %641 = vmatpush1.msra.mxu0 0.0
  %642 = vmatprep.subr.mxu0 0.0
  %643 = vmatpush1.msra.mxu0 0.0
  %644 = vmatprep.subr.mxu0 0.0
  %645 = vmatpush1.msra.mxu0 0.0
  %646 = vmatprep.subr.mxu0 0.0
  %647 = vmatpush1.msra.mxu0 0.0
  %648 = vmatprep.subr.mxu0 0.0
  %649 = vmatpush1.msra.mxu0 0.0
  %650 = vmatprep.subr.mxu0 0.0
  %651 = vmatpush1.msra.mxu0 0.0
  %652 = vmatprep.subr.mxu0 0.0
  %653 = vmatpush1.msra.mxu0 0.0
  %654 = vmatprep.subr.mxu0 0.0
  %655 = vmatpush1.msra.mxu0 %v624
  %656 = vmatprep.subr.mxu0 0.0
  %657 = vmatpush1.msra.mxu0 %v623
  %658 = vmatprep.subr.mxu0 0.0
  %659 = vmatpush1.msra.mxu0 %v622
  %660 = vmatprep.subr.mxu0 0.0
  %661 = vmatpush2.msra.mxu0 0.0
  %662 = vmatprep.subr.mxu0 0.0
  %663 = vmatpush2.msra.mxu0 0.0
  %664 = vmatprep.subr.mxu0 0.0
  %665 = vmatpush2.msra.mxu0 0.0
  %666 = vmatprep.subr.mxu0 0.0
  %667 = vmatpush2.msra.mxu0 0.0
  %668 = vmatprep.subr.mxu0 0.0
  %669 = vmatpush2.msra.mxu0 0.0
  %670 = vmatprep.subr.mxu0 0.0
  %671 = vmatpush2.msra.mxu0 0.0
  %672 = vmatprep.subr.mxu0 0.0
  %673 = vmatpush2.msra.mxu0 0.0
  %674 = vmatprep.subr.mxu0 0.0
  %675 = vmatpush2.msra.mxu0 0.0
  %676 = vmatprep.subr.mxu0 0.0
  %677 = vmatpush2.msra.mxu0 0.0
  %678 = vmatprep.subr.mxu0 0.0
  %679 = vmatpush2.msra.mxu0 0.0
  %680 = vmatprep.subr.mxu0 0.0
  %681 = vmatpush2.msra.mxu0 0.0
  %682 = vmatprep.subr.mxu0 0.0
  %683 = vmatpush2.msra.mxu0 0.0
  %684 = vmatprep.subr.mxu0 0.0
  %685 = vmatpush2.msra.mxu0 0.0
  %686 = vmatprep.subr.mxu0 0.0
  %687 = vmatpush2.msra.mxu0 0.0
  %688 = vmatprep.subr.mxu0 0.0
  %689 = vmatpush2.msra.mxu0 0.0
  %690 = vmatprep.subr.mxu0 0.0
  %691 = vmatpush2.msra.mxu0 0.0
  %692 = vmatprep.mubr.f32.mxu0 0.0
  %693 = vmatmul.mubr.f32.gmra.mxu0 %v626
  %v694 = vpop.f32.mrf.mxu0
  %v695 = vadd.f32 0.0, %v694
  %v696 = vpop.f32.mrf.mxu0
  %697 = vdwg.mxu0
  %v698 = vadd.f32 %v620, %v695
  %s699 = scalar_lea.vmem %s5, 48
  %v700 = vld [vmem:[%s699] sm:$0xff]
  %v701 = vld [vmem:[%s699 + $0x8] sm:$0xff]
  %v702 = vld [vmem:[%s699 + $0x10] sm:$0xff]
  %v704 = vsel %vm540, %v533, 0
  %706 = vmatprep.subr.mxu0 0.0
  %707 = vmatpush1.msra.mxu0 0.0
  %708 = vmatprep.subr.mxu0 0.0
  %709 = vmatpush1.msra.mxu0 0.0
  %710 = vmatprep.subr.mxu0 0.0
  %711 = vmatpush1.msra.mxu0 0.0
  %712 = vmatprep.subr.mxu0 0.0
  %713 = vmatpush1.msra.mxu0 0.0
  %714 = vmatprep.subr.mxu0 0.0
  %715 = vmatpush1.msra.mxu0 0.0
  %716 = vmatprep.subr.mxu0 0.0
  %717 = vmatpush1.msra.mxu0 0.0
  %718 = vmatprep.subr.mxu0 0.0
  %719 = vmatpush1.msra.mxu0 0.0
  %720 = vmatprep.subr.mxu0 0.0
  %721 = vmatpush1.msra.mxu0 0.0
  %722 = vmatprep.subr.mxu0 0.0
  %723 = vmatpush1.msra.mxu0 0.0
  %724 = vmatprep.subr.mxu0 0.0
  %725 = vmatpush1.msra.mxu0 0.0
  %726 = vmatprep.subr.mxu0 0.0
  %727 = vmatpush1.msra.mxu0 0.0
  %728 = vmatprep.subr.mxu0 0.0
  %729 = vmatpush1.msra.mxu0 0.0
  %730 = vmatprep.subr.mxu0 0.0
  %731 = vmatpush1.msra.mxu0 0.0
  %732 = vmatprep.subr.mxu0 0.0
  %733 = vmatpush1.msra.mxu0 %v702
  %734 = vmatprep.subr.mxu0 0.0
  %735 = vmatpush1.msra.mxu0 %v701
  %736 = vmatprep.subr.mxu0 0.0
  %737 = vmatpush1.msra.mxu0 %v700
  %738 = vmatprep.subr.mxu0 0.0
  %739 = vmatpush2.msra.mxu0 0.0
  %740 = vmatprep.subr.mxu0 0.0
  %741 = vmatpush2.msra.mxu0 0.0
  %742 = vmatprep.subr.mxu0 0.0
  %743 = vmatpush2.msra.mxu0 0.0
  %744 = vmatprep.subr.mxu0 0.0
  %745 = vmatpush2.msra.mxu0 0.0
  %746 = vmatprep.subr.mxu0 0.0
  %747 = vmatpush2.msra.mxu0 0.0
  %748 = vmatprep.subr.mxu0 0.0
  %749 = vmatpush2.msra.mxu0 0.0
  %750 = vmatprep.subr.mxu0 0.0
  %751 = vmatpush2.msra.mxu0 0.0
  %752 = vmatprep.subr.mxu0 0.0
  %753 = vmatpush2.msra.mxu0 0.0
  %754 = vmatprep.subr.mxu0 0.0
  %755 = vmatpush2.msra.mxu0 0.0
  %756 = vmatprep.subr.mxu0 0.0
  %757 = vmatpush2.msra.mxu0 0.0
  %758 = vmatprep.subr.mxu0 0.0
  %759 = vmatpush2.msra.mxu0 0.0
  %760 = vmatprep.subr.mxu0 0.0
  %761 = vmatpush2.msra.mxu0 0.0
  %762 = vmatprep.subr.mxu0 0.0
  %763 = vmatpush2.msra.mxu0 0.0
  %764 = vmatprep.subr.mxu0 0.0
  %765 = vmatpush2.msra.mxu0 0.0
  %766 = vmatprep.subr.mxu0 0.0
  %767 = vmatpush2.msra.mxu0 0.0
  %768 = vmatprep.subr.mxu0 0.0
  %769 = vmatpush2.msra.mxu0 0.0
  %770 = vmatprep.mubr.f32.mxu0 0.0
  %771 = vmatmul.mubr.f32.gmra.mxu0 %v704
  %v772 = vpop.f32.mrf.mxu0
  %v773 = vadd.f32 0.0, %v772
  %v774 = vpop.f32.mrf.mxu0
  %775 = vdwg.mxu0
  %v776 = vadd.f32 %v698, %v773
  %v777 = vmin.f32 %v776, 0.0
  %v778 = vmul.f32 %v777, 1.442695
  %v779 = vpow.pop %v778
  %v780 = vsub.f32 %v779, 1.0
  %v781 = vmul.f32 %v780, 1.6732632
  %vm782 = vcmp.gt.f32.partialorder %v776, 0.0
  %v783 = vsel %vm782, %v776, %v781
  %v784 = vmul.f32 %v783, 1.050701
  %785 = vst [vmem:[%s7] sm:$0xff] %v784
  // Predicated region
  $region30: #{_forward_impl.1} parent=0 // pred_check
    _
  $region31: #{_forward_impl.1} parent=0 // pred_check_branch
    %787 = sbr.rel (0) target = $region33
  $region32: #{_forward_impl.1} parent=0 // pred_region
    _
  $region33: #{_forward_impl.1} parent=0 // pred_fallthru
    _
  // Predicated region
  $region34: #{_forward_impl.1} parent=0 // pred_check
    _
  $region35: #{_forward_impl.1} parent=0 // pred_check_branch
    %789 = sbr.rel (0) target = $region37
  $region36: #{_forward_impl.1} parent=0 // pred_region
    _
  $region37: #{_forward_impl.1} parent=0 // pred_fallthru
    _

</llo_original>
